<compile_context>
chip_gen: v7x
topology: tpu7x:2x2x1
jax: 0.10.0
libtpu: 0.0.40
codegen_flags: <defaults>
</compile_context>

<pallas_src>
import jax
import jax.numpy as jnp
import numpy as np
from jax.experimental import pallas as pl
from jax.experimental.pallas import tpu as pltpu

LANES = 128
NEG_BIG = -1e30  # effectively -inf for the softmax pad lanes


# --------------------------------------------------------------------------
# One-time parameter preparation (hoisted out of the forward pass).
# --------------------------------------------------------------------------
def prepare_params(params, batch_size, f_dim, h_dim):
    """Pack (w1,b1,w2,b2,w3,b3) [PyTorch Linear layout] into one padded slab."""
    w1, b1, w2, b2, w3, b3 = (np.asarray(p, np.float32) for p in params)
    B, F, H = batch_size, f_dim, h_dim
    M = w2.shape[0]  # int(B*H/100)

    assert H + 1 <= LANES, "h_dim (+1 bias lane) must fit in one lane tile"
    assert B <= LANES
    assert M + 2 <= 8, "b1, b3 and w3^T must fit in one 8-row tile"

    n_w1 = ((F + 7) // 8) * 8        # rows [0, n_w1): w1^T (F live rows, 8-aligned)
    vec_row = n_w1                   # 8-row tile: b1 / b3 / w3^T
    w2_row = n_w1 + 8                # rows [w2_row, w2_row + M*B): w2 as (M, B, H)
    R = ((w2_row + M * B + 7) // 8) * 8

    slab = np.zeros((R, LANES), np.float32)
    # layer 1: w1^T and b1 (lane H holds a constant 1.0 used to fold b2 below)
    slab[:F, :H] = w1.T
    slab[vec_row, :H] = b1
    slab[vec_row, H] = 1.0
    # layer 3: b3 (pad lanes = -1e30 so softmax ignores them) and w3^T (M, B)
    slab[vec_row + 1, :B] = b3
    slab[vec_row + 1, B:] = NEG_BIG
    slab[vec_row + 2:vec_row + 2 + M, :B] = w3.T
    # layer 2: w2 rearranged to (M, B, H) rows; b2 folded via the "ones" lane H
    slab[w2_row:w2_row + M * B, :H] = w2.reshape(M * B, H)
    slab[w2_row + np.arange(M) * B, H] = b2

    meta = dict(B=B, F=F, H=H, M=M, n_w1=n_w1, vec_row=vec_row, w2_row=w2_row, R=R)
    return jnp.asarray(slab), meta


# --------------------------------------------------------------------------
# Kernel (one grid step == one independent forward pass)
# --------------------------------------------------------------------------
def _make_kernel(meta):
    F_pad, B, M = meta["n_w1"], meta["B"], meta["M"]
    vec_row, w2_row = meta["vec_row"], meta["w2_row"]

    def kernel(x_ref, p_ref, o_ref):
        # x block: (1, B, F_pad) for this grid step
        x = x_ref[0]                                              # (B, F_pad)

        # One aligned (8,128) load for all small vectors; slice in-register.
        vec = p_ref[vec_row:vec_row + 8, :]
        b1 = vec[0:1, :]                                          # (1, 128)
        b3 = vec[1:2, :]                                          # (1, 128), -1e30 pads
        w3t = vec[2:2 + M, :]                                     # (M, 128)

        # ---- layer 1 (MXU): (B, F_pad) @ (F_pad, 128) + b1 ------------------
        w1t = p_ref[0:F_pad, :]                                   # 8-aligned slice
        h = jnp.dot(x, w1t, preferred_element_type=jnp.float32) + b1   # (B, 128)

        # ---- layer 2 (VPU + XLU): one fused contraction over (B, H) ---------
        # w2 laid out (M, B, 128); lane H of the b==0 row carries b2[m], which
        # multiplies the constant-1 lane of h, folding the bias in.
        # 32 rows / 8-aligned: the reshape is a pure view (verified to not
        # introduce a VMEM relayout).
        w2 = p_ref[w2_row:w2_row + M * B, :].reshape(M, B, LANES)
        t = jnp.sum(w2 * h[None, :, :], axis=2)                   # (M, B)  lane reduce
        mid = jnp.sum(t, axis=1, keepdims=True)                   # (M, 1)

        # ---- layer 3 (VPU + XLU): broadcast-multiply + sublane reduce -------
        logits = jnp.sum(mid * w3t, axis=0, keepdims=True) + b3   # (1, 128)

        # ---- softmax over lanes (pad lanes contribute exp(-1e30) == 0) ------
        mx = jnp.max(logits, axis=-1, keepdims=True)
        e = jnp.exp(logits - mx)
        inv = pl.reciprocal(jnp.sum(e, axis=-1, keepdims=True), approx=False)
        o_ref[0] = e * inv                                         # lane-dense store

    return kernel


# --------------------------------------------------------------------------
# Wrapper: N forwards per pallas_call, weight slab VMEM-resident.
# --------------------------------------------------------------------------
def make_forward(meta):
    """fwd(xs, slab): xs (N, B, F) -> padded probs (N, 1, 128); lanes [:B] live."""
    B, F, R, F_pad = meta["B"], meta["F"], meta["R"], meta["n_w1"]
    kernel = _make_kernel(meta)

    def _build(n_steps):
        grid_spec = pltpu.PrefetchScalarGridSpec(
            num_scalar_prefetch=0,
            grid=(n_steps,),
            in_specs=[
                # one forward's input per grid step
                pl.BlockSpec((1, B, F_pad), lambda n: (n, 0, 0)),
                # constant index_map: slab stays resident in VMEM, DMA'd once
                pl.BlockSpec((R, LANES), lambda n: (0, 0)),
            ],
            out_specs=pl.BlockSpec((1, 1, LANES), lambda n: (n, 0, 0)),
        )
        return pl.pallas_call(
            kernel,
            out_shape=jax.ShapeDtypeStruct((n_steps, 1, LANES), jnp.float32),
            grid_spec=grid_spec,
            compiler_params=pltpu.CompilerParams(
                # independent forwards shard cleanly across v7x's two TCs
                dimension_semantics=("parallel",)),
        )

    @jax.jit
    def fwd(xs, slab):
        n_steps = xs.shape[0]
        # zero-width (no-op) pad when F % 8 == 0; keeps w1^T slice 8-aligned.
        xs = jnp.pad(xs, ((0, 0), (0, 0), (0, F_pad - F)))
        return _build(n_steps)(xs, slab)

    return fwd


# --------------------------------------------------------------------------
# Pure-JAX reference (mirrors the PyTorch module exactly)
# --------------------------------------------------------------------------
def _ref_forward(x, params):
    w1, b1, w2, b2, w3, b3 = params
    h = x @ w1.T + b1
    flat = h.reshape(-1)
    mid = flat @ w2.T + b2
    out = mid @ w3.T + b3
    e = jnp.exp(out - jnp.max(out))
    return e / jnp.sum(e)


def _init_linear(key, out_f, in_f):
    """Deterministic PyTorch-style Linear init: U(-1/sqrt(in_f), 1/sqrt(in_f))."""
    kw, kb = jax.random.split(key)
    bound = 1.0 / np.sqrt(in_f)
    w = jax.random.uniform(kw, (out_f, in_f), jnp.float32, -bound, bound)
    b = jax.random.uniform(kb, (out_f,), jnp.float32, -bound, bound)
    return w, b


if __name__ == "__main__":
    # NaiveNN(batch_size=8, f_dim=16, h_dim=50)
    #   hidden_layer:    Linear(16, 50)
    #   flattened_layer: Linear(8*50=400, int(400/100)=4)
    #   output_layer:    Linear(4, 8)
    batch_size, f_dim, h_dim = 8, 16, 50
    m_dim = int(batch_size * h_dim / 100)
    n_forwards = 8  # N independent forwards amortized under one pallas_call

    key = jax.random.PRNGKey(0)
    kx, k1, k2, k3 = jax.random.split(key, 4)

    xs = jax.random.normal(kx, (n_forwards, batch_size, f_dim), jnp.float32)
    w1, b1 = _init_linear(k1, h_dim, f_dim)
    w2, b2 = _init_linear(k2, m_dim, batch_size * h_dim)
    w3, b3 = _init_linear(k3, batch_size, m_dim)
    params = (w1, b1, w2, b2, w3, b3)

    # One-time parameter prep (transposes / padding / packing hoisted here).
    slab, meta = prepare_params(params, batch_size, f_dim, h_dim)
    naive_nn_forward = make_forward(meta)

    y = naive_nn_forward(xs, slab)          # (N, 1, 128) padded probability rows
    jax.block_until_ready(y)

    probs = np.asarray(y)[:, 0, :batch_size]   # consumer handles padding
    for i in range(n_forwards):
        y_ref = np.asarray(_ref_forward(xs[i], params))
        assert np.allclose(probs[i], y_ref, rtol=1e-4, atol=1e-5), (
            f"forward {i} mismatch: {probs[i]} vs {y_ref}")
        assert np.isclose(probs[i].sum(), 1.0, atol=1e-5)

    print("KERNEL_OK")
</pallas_src>

<mosaic_0001>
module attributes {stable_mosaic.version = 11 : i64} {
  func.func @kernel(%arg0: i32, %arg1: memref<1x8x16xf32, #tpu.memory_space<vmem>>, %arg2: memref<56x128xf32, #tpu.memory_space<vmem>>, %arg3: memref<1x1x128xf32, #tpu.memory_space<vmem>>) attributes {dimension_semantics = [#tpu.dimension_semantics<parallel>], iteration_bounds = array<i64: 8>, scalar_prefetch = 0 : i64, scratch_operands = 0 : i64, tpu.core_type = #tpu.core_type<tc>, window_params = [{transform_indices = @transform_0, window_bounds = array<i64: 1, 8, 16>}, {pipeline_mode = #tpu.pipeline_mode<synchronous>, transform_indices = @transform_1, window_bounds = array<i64: 56, 128>}, {transform_indices = @transform_2, window_bounds = array<i64: 1, 1, 128>}]} {
    %c0 = arith.constant 0 : index
    %c0_0 = arith.constant 0 : index
    %c0_1 = arith.constant 0 : index
    %0 = vector.load %arg1[%c0, %c0_0, %c0_1] : memref<1x8x16xf32, #tpu.memory_space<vmem>>, vector<1x8x16xf32>
    %1 = vector.shape_cast %0 : vector<1x8x16xf32> to vector<8x16xf32>
    %c16 = arith.constant 16 : index
    %c0_2 = arith.constant 0 : index
    %2 = vector.load %arg2[%c16, %c0_2] : memref<56x128xf32, #tpu.memory_space<vmem>>, vector<8x128xf32>
    %3 = vector.extract_strided_slice %2 {offsets = [0, 0], sizes = [1, 128], strides = [1, 1]} : vector<8x128xf32> to vector<1x128xf32>
    %4 = vector.extract_strided_slice %2 {offsets = [1, 0], sizes = [1, 128], strides = [1, 1]} : vector<8x128xf32> to vector<1x128xf32>
    %5 = vector.extract_strided_slice %2 {offsets = [2, 0], sizes = [4, 128], strides = [1, 1]} : vector<8x128xf32> to vector<4x128xf32>
    %c0_3 = arith.constant 0 : index
    %c0_4 = arith.constant 0 : index
    %6 = vector.load %arg2[%c0_3, %c0_4] : memref<56x128xf32, #tpu.memory_space<vmem>>, vector<16x128xf32>
    %cst = arith.constant dense<0.000000e+00> : vector<8x128xf32>
    %7 = tpu.matmul %1, %6, %cst {dimension_numbers = #tpu.dot_dimension_numbers<[1], [0], [0], [1], [0, 0, 1, 1], [], []>} : vector<8x16xf32>, vector<16x128xf32>, vector<8x128xf32> -> vector<8x128xf32>
    %8 = vector.broadcast %3 : vector<1x128xf32> to vector<8x128xf32>
    %9 = arith.addf %7, %8 : vector<8x128xf32>
    %c24 = arith.constant 24 : index
    %c0_5 = arith.constant 0 : index
    %10 = vector.load %arg2[%c24, %c0_5] : memref<56x128xf32, #tpu.memory_space<vmem>>, vector<32x128xf32>
    %11 = vector.shape_cast %10 : vector<32x128xf32> to vector<4x8x128xf32>
    %12 = vector.shape_cast %9 : vector<8x128xf32> to vector<1x8x128xf32>
    %13 = vector.broadcast %12 : vector<1x8x128xf32> to vector<4x8x128xf32>
    %14 = arith.mulf %11, %13 : vector<4x8x128xf32>
    %cst_6 = arith.constant dense<0.000000e+00> : vector<4x8xf32>
    %15 = vector.multi_reduction <add>, %14, %cst_6 [2] : vector<4x8x128xf32> to vector<4x8xf32>
    %cst_7 = arith.constant dense<0.000000e+00> : vector<4xf32>
    %16 = vector.multi_reduction <add>, %15, %cst_7 [1] : vector<4x8xf32> to vector<4xf32>
    %17 = vector.shape_cast %16 : vector<4xf32> to vector<4x1xf32>
    %18 = vector.broadcast %17 : vector<4x1xf32> to vector<4x128xf32>
    %19 = arith.mulf %18, %5 : vector<4x128xf32>
    %cst_8 = arith.constant dense<0.000000e+00> : vector<128xf32>
    %20 = vector.multi_reduction <add>, %19, %cst_8 [0] : vector<4x128xf32> to vector<128xf32>
    %21 = vector.shape_cast %20 : vector<128xf32> to vector<1x128xf32>
    %22 = arith.addf %21, %4 : vector<1x128xf32>
    %cst_9 = arith.constant dense<0xFF800000> : vector<1xf32>
    %23 = vector.multi_reduction <maximumf>, %22, %cst_9 [1] : vector<1x128xf32> to vector<1xf32>
    %24 = vector.shape_cast %23 : vector<1xf32> to vector<1x1xf32>
    %25 = vector.broadcast %24 : vector<1x1xf32> to vector<1x128xf32>
    %26 = arith.subf %22, %25 : vector<1x128xf32>
    %27 = math.exp %26 : vector<1x128xf32>
    %cst_10 = arith.constant dense<0.000000e+00> : vector<1xf32>
    %28 = vector.multi_reduction <add>, %27, %cst_10 [1] : vector<1x128xf32> to vector<1xf32>
    %29 = vector.shape_cast %28 : vector<1xf32> to vector<1x1xf32>
    %30 = tpu.reciprocal %29 : vector<1x1xf32> -> vector<1x1xf32>
    %31 = vector.broadcast %30 : vector<1x1xf32> to vector<1x128xf32>
    %32 = arith.mulf %27, %31 : vector<1x128xf32>
    %c0_11 = arith.constant 0 : index
    %c0_12 = arith.constant 0 : index
    %c0_13 = arith.constant 0 : index
    %33 = vector.load %arg3[%c0_11, %c0_12, %c0_13] : memref<1x1x128xf32, #tpu.memory_space<vmem>>, vector<1x1x128xf32>
    %34 = vector.shape_cast %33 : vector<1x1x128xf32> to vector<1x128xf32>
    %35 = vector.shape_cast %32 : vector<1x128xf32> to vector<1x1x128xf32>
    tpu.vector_store %arg3[%c0_11, %c0_12, %c0_13], %35 {strides = array<i32>} : memref<1x1x128xf32, #tpu.memory_space<vmem>>, vector<1x1x128xf32>,
    return
  }
  func.func @transform_0(%arg0: i32) -> (i32, i32, i32) {
    %c0_i32 = arith.constant 0 : i32
    %c0_i32_0 = arith.constant 0 : i32
    %c0_i32_1 = arith.constant 0 : i32
    return %arg0, %c0_i32, %c0_i32_0 : i32, i32, i32
  }
  func.func @transform_1(%arg0: i32) -> (i32, i32) {
    %c0_i32 = arith.constant 0 : i32
    %c0_i32_0 = arith.constant 0 : i32
    %c0_i32_1 = arith.constant 0 : i32
    return %c0_i32, %c0_i32_0 : i32, i32
  }
  func.func @transform_2(%arg0: i32) -> (i32, i32, i32) {
    %c0_i32 = arith.constant 0 : i32
    %c0_i32_0 = arith.constant 0 : i32
    %c0_i32_1 = arith.constant 0 : i32
    return %arg0, %c0_i32, %c0_i32_0 : i32, i32, i32
  }
}

</mosaic_0001>

<llo_original>
// kernel: fwd.1
$region0: #{fwd.1}
  #allocation0 [shape = 'u32[]', space=smem, size = 0x4, offset = 0x4, fixed_abs, tag = 'smem constant byte address 0x4 - core index']
  #allocation1 [shape = 'u32[144,128]{1,0:T(1,128)}', space=vmem, size = 0x12000, scoped, tag = 'internal scratch']
  %s0 = inlined_call_operand.hbm [shape: f32[8,8,16], index: 0, kind: input, shape index: {}]
  %s1 = inlined_call_operand.hbm [shape: f32[56,128], index: 1, kind: input, shape index: {}]
  %s2 = inlined_call_operand.hbm [shape: f32[8,1,128], index: 2, kind: output, shape index: {}]
  %s3 = sld [smem:[#allocation0]]
  $region49: #{fwd.1} parent=0
    _
  %s5 = ssub.s32 1, %s3
  %s6 = scalar_select 0, %s5, %s3
  $region1: #{fwd.1} parent=0
    #allocation2 [shape = 'u8[8192]{0}', space=vmem, size = 0x2000, scoped, tag = 'input window, operand 0']
    #allocation3 [shape = 's32[2]{0}', space=sflag, size = 0x8, scoped, tag = 'scoped memory for fwd.1']
    #allocation4 [shape = 's32[2]{0}', space=sflag, size = 0x8, scoped, tag = 'scoped memory for fwd.1']
    #allocation5 [shape = 'u8[28672]{0}', space=vmem, size = 0x7000, scoped, tag = 'input window, operand 1, single buffered']
    #allocation6 [shape = 's32[1]{0}', space=sflag, size = 0x4, scoped, tag = 'scoped memory for fwd.1']
    #allocation7 [shape = 'u8[1024]{0}', space=vmem, size = 0x400, scoped, tag = 'output window, operand 0']
    %7 = vsyncpa [#allocation3], 0
    %s8 = scalar_lea.sflag [#allocation3], 1
    %9 = vsyncpa %s8, 0
    %10 = vsyncpa [#allocation6], 0
    %11 = vsyncpa [#allocation4], 0
    %s12 = scalar_lea.sflag [#allocation4], 1
    %13 = vsyncpa %s12, 0
    loop: start=0, step=1, limit=10
    $region2: #{fwd.1} parent=1 // loop_pre_header
      _
    $region3: #{fwd.1} parent=1 // loop_header
      %s15 = sphi 0, %s19
      %p16 = scmp.ge.s32.totalorder %s15, 10
      %s25 = sphi 0, %s27
      %s28 = sphi 0, %s25
      %s29 = sphi 0, %s28
      %s45 = sphi 0, %s29
      %s49 = sphi 0, %s49
      %s51 = sphi 0, %s49
      %s52 = sphi 0, %s51
      %s66 = sphi 0, %s52
      %s72 = sphi 0, %s74
      %s75 = sphi 0, %s72
      %s76 = sphi 0, %s75
      %s92 = sphi 0, %s76
    $region4: #{fwd.1} parent=1 // loop_header_branch
      %18 = sbr.rel (%p16) target = $region8
    $region5: #{fwd.1} parent=1 // loop_body
      %s20 = ssub.s32 %s15, 1
      %s21 = ssub.s32 %s15, 2
      %s22 = sadd.s32 %s15, 1
      %s23 = ssub.s32 %s15, %s22
      %p24 = scmp.eq.s32.totalorder %s23, 0
      %s26 = sadd.s32 %s25, 1
      %s27 = scalar_select %p24, %s25, %s26
      %p30 = pneg %p24
      %p31 = scmp.eq.s32.totalorder %s15, 7
      %p32 = por %p30, %p31
      %p33 = scmp.ne.s32.totalorder %s25, %s28
      %p34 = scmp.eq.s32.totalorder %s15, 0
      %p35 = por %p33, %p34
      %p36 = scmp.ne.s32.totalorder %s25, %s28
      %p37 = scmp.eq.s32.totalorder %s20, 7
      %p38 = por %p36, %p37
      %p39 = scmp.ne.s32.totalorder %s28, %s29
      %p40 = scmp.eq.s32.totalorder %s20, 0
      %p41 = por %p39, %p40
      %p42 = scmp.ne.s32.totalorder %s28, %s29
      %p43 = scmp.eq.s32.totalorder %s21, 7
      %p44 = por %p42, %p43
      %p46 = scmp.ne.s32.totalorder %s29, %s45
      %p47 = scmp.eq.s32.totalorder %s21, 0
      %p48 = por %p46, %p47
      %s50 = sadd.s32 %s49, 1
      %p53 = scmp.eq.s32.totalorder %s15, 7
      %p54 = scmp.ne.s32.totalorder %s49, %s51
      %p55 = scmp.eq.s32.totalorder %s15, 0
      %p56 = por %p54, %p55
      %p57 = scmp.ne.s32.totalorder %s49, %s51
      %p58 = scmp.eq.s32.totalorder %s20, 7
      %p59 = por %p57, %p58
      %p60 = scmp.ne.s32.totalorder %s51, %s52
      %p61 = scmp.eq.s32.totalorder %s20, 0
      %p62 = por %p60, %p61
      %p63 = scmp.ne.s32.totalorder %s51, %s52
      %p64 = scmp.eq.s32.totalorder %s21, 7
      %p65 = por %p63, %p64
      %p67 = scmp.ne.s32.totalorder %s52, %s66
      %p68 = scmp.eq.s32.totalorder %s21, 0
      %p69 = por %p67, %p68
      %s70 = ssub.s32 %s15, %s22
      %p71 = scmp.eq.s32.totalorder %s70, 0
      %s73 = sadd.s32 %s72, 1
      %s74 = scalar_select %p71, %s72, %s73
      %p77 = pneg %p71
      %p78 = scmp.eq.s32.totalorder %s15, 7
      %p79 = por %p77, %p78
      %p80 = scmp.ne.s32.totalorder %s72, %s75
      %p81 = scmp.eq.s32.totalorder %s15, 0
      %p82 = por %p80, %p81
      %p83 = scmp.ne.s32.totalorder %s72, %s75
      %p84 = scmp.eq.s32.totalorder %s20, 7
      %p85 = por %p83, %p84
      %p86 = scmp.ne.s32.totalorder %s75, %s76
      %p87 = scmp.eq.s32.totalorder %s20, 0
      %p88 = por %p86, %p87
      %p89 = scmp.ne.s32.totalorder %s75, %s76
      %p90 = scmp.eq.s32.totalorder %s21, 7
      %p91 = por %p89, %p90
      %p93 = scmp.ne.s32.totalorder %s76, %s92
      %p94 = scmp.eq.s32.totalorder %s21, 0
      %p95 = por %p93, %p94
      %p96 = scmp.le.s32.totalorder 1, %s15
      %p97 = scmp.lt.s32.totalorder %s15, 9
      %p98 = pnand %p96, %p97
      %p99 = pneg %p98
      // Predicated region
      $region9: #{fwd.1} parent=5 // pred_check
        _
      $region10: #{fwd.1} parent=5 // pred_check_branch
        %101 = sbr.rel (%p98) target = $region12
      $region11: #{fwd.1} parent=5 // pred_region
        %s102 = ssub.s32 %s15, 1
        // Predicated region
        $region13: #{fwd.1} parent=11 // pred_check
          %p103 = pneg %p62
        $region14: #{fwd.1} parent=11 // pred_check_branch
          %105 = sbr.rel (%p103) target = $region16
        $region15: #{fwd.1} parent=11 // pred_region
          %s107 = ssub.s32 896, 896
          %108 = vsyncadd [#allocation6], %s107
          %s109 = sshll.u32 [#allocation5], 4
          %s110 = int_to_ptr.vmem [resolvable:$true] %s109
          %115 = dma.hbm_to_vmem [thread:$0]  %s1, 896, %s110, [#allocation6], 128, 128, 8
        $region16: #{fwd.1} parent=11 // pred_fallthru
          _
      $region12: #{fwd.1} parent=5 // pred_fallthru
        _
      %p116 = scmp.lt.s32.totalorder %s15, 8
      // Predicated region
      $region17: #{fwd.1} parent=5 // pred_check
        %p117 = pneg %p116
      $region18: #{fwd.1} parent=5 // pred_check_branch
        %119 = sbr.rel (%p117) target = $region20
      $region19: #{fwd.1} parent=5 // pred_region
        // Predicated region
        $region21: #{fwd.1} parent=19 // pred_check
          %p120 = pneg %p35
        $region22: #{fwd.1} parent=19 // pred_check_branch
          %122 = sbr.rel (%p120) target = $region24
        $region23: #{fwd.1} parent=19 // pred_region
          %s123 = sand.u32 %s25, 1
          %s124 = scalar_lea.sflag [#allocation3], %s123
          %s125 = sand.u32 %s25, 1
          %s126 = smul.addr %s125, 8
          %s127 = scalar_lea.vmem [#allocation2], %s126
          %s129 = ssub.s32 128, 128
          %130 = vsyncadd %s124, %s129
          %s131 = smul.addr %s15, 128
          %s132 = scalar_lea.hbm %s0, %s131
          %s134 = sshll.u32 %s127, 4
          %s135 = int_to_ptr.vmem [resolvable:$true] %s134
          %137 = dma.hbm_to_vmem [thread:$0]  %s132, 128, %s135, %s124
        $region24: #{fwd.1} parent=19 // pred_fallthru
          _
      $region20: #{fwd.1} parent=5 // pred_fallthru
        _
      %p138 = scmp.le.s32.totalorder 1, %s15
      %p139 = scmp.lt.s32.totalorder %s15, 9
      %p140 = pnand %p138, %p139
      %p141 = pneg %p140
      // Predicated region
      $region25: #{fwd.1} parent=5 // pred_check
        _
      $region26: #{fwd.1} parent=5 // pred_check_branch
        %143 = sbr.rel (%p140) target = $region28
      $region27: #{fwd.1} parent=5 // pred_region
        %s144 = ssub.s32 %s15, 1
        %s145 = sand.u32 %s28, 1
        %s146 = scalar_lea.sflag [#allocation3], %s145
        %s147 = sand.u32 %s28, 1
        %s148 = smul.addr %s147, 8
        %s149 = scalar_lea.vmem [#allocation2], %s148
        // Predicated region
        $region29: #{fwd.1} parent=27 // pred_check
          %p150 = pneg %p41
        $region30: #{fwd.1} parent=27 // pred_check_branch
          %152 = sbr.rel (%p150) target = $region32
        $region31: #{fwd.1} parent=27 // pred_region
          %153 = dma.done %s146, 128
        $region32: #{fwd.1} parent=27 // pred_fallthru
          _
        // Predicated region
        $region33: #{fwd.1} parent=27 // pred_check
          %p154 = pneg %p62
        $region34: #{fwd.1} parent=27 // pred_check_branch
          %156 = sbr.rel (%p154) target = $region36
        $region35: #{fwd.1} parent=27 // pred_region
          %157 = dma.done [#allocation6], 896
        $region36: #{fwd.1} parent=27 // pred_fallthru
          _
        %s158 = sand.u32 %s28, 1
        %s159 = scalar_lea.sflag [#allocation3], %s158
        %s160 = sand.u32 %s28, 1
        %s161 = smul.addr %s160, 8
        %s162 = scalar_lea.vmem [#allocation2], %s161
        %p163 = pneg %p41
        %p164 = pneg %p38
        %p165 = pneg %p62
        %p166 = pneg %p59
        %p167 = pneg %p88
        %p168 = pneg %p85
        %s169 = sand.u32 %s75, 1
        %s170 = scalar_lea.sflag [#allocation4], %s169
        %s171 = sand.u32 %s75, 1
        %s172 = scalar_lea.vmem [#allocation7], %s171
        %v173 = vld [vmem:[%s149] sm:$0xff]
        %v174 = vld [vmem:[#allocation5 + $0x10] sm:$0xff]
        %v175 = vld [vmem:[#allocation5] sm:$0xff]
        %v176 = vld [vmem:[#allocation5 + $0x8] sm:$0xff]
        %v177 = vlaneseq
        %v178 = vshrl.u32 %v177, 7
        %v179 = vsub.s32 0, %v178
        %v180 = vrot.slane %v174, %v179
        %vm181 = vcmask 130048
        %v183 = vsel %vm181, %v173, 0
        %185 = vmatprep.subr.mxu0 0.0
        %186 = vmatpush1.msra.mxu0 %v175
        %187 = vmatprep.subr.mxu0 0.0
        %188 = vmatpush1.msra.mxu0 %v176
        %189 = vmatprep.subr.mxu0 0.0
        %190 = vmatpush1.msra.mxu0 0.0
        %191 = vmatprep.subr.mxu0 0.0
        %192 = vmatpush1.msra.mxu0 0.0
        %193 = vmatprep.subr.mxu0 0.0
        %194 = vmatpush1.msra.mxu0 0.0
        %195 = vmatprep.subr.mxu0 0.0
        %196 = vmatpush1.msra.mxu0 0.0
        %197 = vmatprep.subr.mxu0 0.0
        %198 = vmatpush1.msra.mxu0 0.0
        %199 = vmatprep.subr.mxu0 0.0
        %200 = vmatpush1.msra.mxu0 0.0
        %201 = vmatprep.subr.mxu0 0.0
        %202 = vmatpush1.msra.mxu0 0.0
        %203 = vmatprep.subr.mxu0 0.0
        %204 = vmatpush1.msra.mxu0 0.0
        %205 = vmatprep.subr.mxu0 0.0
        %206 = vmatpush1.msra.mxu0 0.0
        %207 = vmatprep.subr.mxu0 0.0
        %208 = vmatpush1.msra.mxu0 0.0
        %209 = vmatprep.subr.mxu0 0.0
        %210 = vmatpush1.msra.mxu0 0.0
        %211 = vmatprep.subr.mxu0 0.0
        %212 = vmatpush1.msra.mxu0 0.0
        %213 = vmatprep.subr.mxu0 0.0
        %214 = vmatpush1.msra.mxu0 0.0
        %215 = vmatprep.subr.mxu0 0.0
        %216 = vmatpush1.msra.mxu0 0.0
        %217 = vmatprep.subr.mxu0 0.0
        %218 = vmatpush1.msra.mxu0 0.0
        %219 = vmatprep.subr.mxu0 0.0
        %220 = vmatpush1.msra.mxu0 0.0
        %221 = vmatprep.subr.mxu0 0.0
        %222 = vmatpush1.msra.mxu0 0.0
        %223 = vmatprep.subr.mxu0 0.0
        %224 = vmatpush1.msra.mxu0 0.0
        %225 = vmatprep.subr.mxu0 0.0
        %226 = vmatpush1.msra.mxu0 0.0
        %227 = vmatprep.subr.mxu0 0.0
        %228 = vmatpush1.msra.mxu0 0.0
        %229 = vmatprep.subr.mxu0 0.0
        %230 = vmatpush1.msra.mxu0 0.0
        %231 = vmatprep.subr.mxu0 0.0
        %232 = vmatpush1.msra.mxu0 0.0
        %233 = vmatprep.subr.mxu0 0.0
        %234 = vmatpush1.msra.mxu0 0.0
        %235 = vmatprep.subr.mxu0 0.0
        %236 = vmatpush1.msra.mxu0 0.0
        %237 = vmatprep.subr.mxu0 0.0
        %238 = vmatpush1.msra.mxu0 0.0
        %239 = vmatprep.subr.mxu0 0.0
        %240 = vmatpush1.msra.mxu0 0.0
        %241 = vmatprep.subr.mxu0 0.0
        %242 = vmatpush1.msra.mxu0 0.0
        %243 = vmatprep.subr.mxu0 0.0
        %244 = vmatpush1.msra.mxu0 0.0
        %245 = vmatprep.subr.mxu0 0.0
        %246 = vmatpush1.msra.mxu0 0.0
        %247 = vmatprep.subr.mxu0 0.0
        %248 = vmatpush1.msra.mxu0 0.0
        %249 = vmatprep.mubr.f32.mxu0 0.0
        %250 = vmatmul.mubr.f32.gmra.mrb[0].mxu0 %v183
        %v251 = vpop.f32.mrb[0].mxu0
        %v252 = vadd.f32 %v180, %v251
        %v253 = vpop.f32.mrb[0].mxu0
        %254 = vdwg.mxu0
        %v255 = vld [vmem:[#allocation5 + $0x18] sm:$0xff]
        %v256 = vld [vmem:[#allocation5 + $0x20] sm:$0xff]
        %v257 = vld [vmem:[#allocation5 + $0x28] sm:$0xff]
        %v258 = vld [vmem:[#allocation5 + $0x30] sm:$0xff]
        %v259 = vmul.f32 %v255, %v252
        %v260 = vmul.f32 %v256, %v252
        %v261 = vmul.f32 %v257, %v252
        %v262 = vmul.f32 %v258, %v252
        %263 = vadd.xlane.f32.xlu0 %v259
        %v264 = vpop.xlane.xlu0 %263
        %265 = vadd.xlane.f32.xlu0 %v260
        %v266 = vpop.xlane.xlu0 %265
        %267 = vadd.xlane.f32.xlu0 %v261
        %v268 = vpop.xlane.xlu0 %267
        %269 = vadd.xlane.f32.xlu0 %v262
        %v270 = vpop.xlane.xlu0 %269
        %v275 = vlaneseq
        %v276 = vand.u32 %v275, 127
        %v277 = vlaneseq
        %v278 = vshrl.u32 %v277, 7
        %v279 = vsub.s32 %v276, %v278
        %v280 = vrot.slane %v264, %v279
        %v281 = vlaneseq
        %v282 = vshrl.u32 %v281, 7
        %v283 = vsub.s32 %v276, %v282
        %v284 = vrot.slane %v266, %v283
        %v285 = vlaneseq
        %v286 = vshrl.u32 %v285, 7
        %v287 = vsub.s32 %v276, %v286
        %v288 = vrot.slane %v268, %v287
        %v289 = vlaneseq
        %v290 = vshrl.u32 %v289, 7
        %v291 = vsub.s32 %v276, %v290
        %v292 = vrot.slane %v270, %v291
        %vm293 = vcmask 1041409
        %v294 = vsel %vm293, %v284, %v280
        %vm295 = vcmask 1042434
        %v296 = vsel %vm295, %v288, %v294
        %vm297 = vcmask 1043459
        %v298 = vsel %vm297, %v292, %v296
        %vm300 = vcmask 60416
        %v301 = vsel %vm300, %v298, 0.0
        %302 = vadd.xlane.f32.xlu0 %v301
        %v303 = vpop.xlane.xlu0 %302
        %v305 = vrot.slane %v174, 2
        %v307 = vmul.f32 %v303, %v305
        %vm308 = vcmask 1043456
        %v309 = vsel %vm308, %v307, 0.0
        %v310 = vrot.slane %v309, 4
        %v311 = vadd.f32 %v309, %v310
        %v312 = vrot.slane %v311, 2
        %v313 = vadd.f32 %v311, %v312
        %v314 = vrot.slane %v313, 1
        %v315 = vadd.f32 %v313, %v314
        %v316 = vadd.f32 %v315, %v174
        %v317 = vsel %vm293, %v316, -inf
        %318 = vmax.xlane.f32.xlu0 %v317
        %v319 = vpop.xlane.xlu0 %318
        %v320 = vsub.f32 %v316, %v319
        %v321 = vmul.f32 %v320, 1.442695
        %v322 = vpow.pop %v321
        %v323 = vsel %vm293, %v322, 0.0
        %324 = vadd.xlane.f32.xlu0 %v323
        %v325 = vpop.xlane.xlu0 %324
        %v326 = vrcp.pop %v325
        %v327 = vmul.f32 %v322, %v326
        %328 = vst [vmem:[%s172 - $0x1] sm:$0x2] %v327
        %s329 = sand.u32 %s75, 1
        %s330 = scalar_lea.sflag [#allocation4], %s329
        %s331 = sand.u32 %s75, 1
        %s332 = scalar_lea.vmem [#allocation7], %s331
        // Predicated region
        $region37: #{fwd.1} parent=27 // pred_check
          %p333 = pneg %p85
        $region38: #{fwd.1} parent=27 // pred_check_branch
          %335 = sbr.rel (%p333) target = $region40
        $region39: #{fwd.1} parent=27 // pred_region
          %s337 = ssub.s32 16, 16
          %338 = vsyncadd %s330, %s337
          %s339 = smul.addr %s20, 16
          %s340 = scalar_lea.hbm %s2, %s339
          %s342 = sshll.u32 %s332, 4
          %s343 = int_to_ptr.vmem [resolvable:$true] %s342
          %345 = dma.vmem_to_hbm [thread:$0]  %s343, 16, %s340, %s330
        $region40: #{fwd.1} parent=27 // pred_fallthru
          _
      $region28: #{fwd.1} parent=5 // pred_fallthru
        _
      %p346 = scmp.le.s32.totalorder 2, %s15
      // Predicated region
      $region41: #{fwd.1} parent=5 // pred_check
        %p347 = pneg %p346
      $region42: #{fwd.1} parent=5 // pred_check_branch
        %349 = sbr.rel (%p347) target = $region44
      $region43: #{fwd.1} parent=5 // pred_region
        %s350 = ssub.s32 %s15, 2
        // Predicated region
        $region45: #{fwd.1} parent=43 // pred_check
          %p351 = pneg %p91
        $region46: #{fwd.1} parent=43 // pred_check_branch
          %353 = sbr.rel (%p351) target = $region48
        $region47: #{fwd.1} parent=43 // pred_region
          %s354 = sand.u32 %s76, 1
          %s355 = scalar_lea.sflag [#allocation4], %s354
          %s356 = sand.u32 %s76, 1
          %s357 = scalar_lea.vmem [#allocation7], %s356
          %358 = dma.done %s355, 16
        $region48: #{fwd.1} parent=43 // pred_fallthru
          _
      $region44: #{fwd.1} parent=5 // pred_fallthru
        _
    $region6: #{fwd.1} parent=1 // loop_footer
      %s19 = sadd.s32 1, %s15
    $region7: #{fwd.1} parent=1 // loop_footer_branch
      %14 = sbr.rel target = $region3
    $region8: #{fwd.1} parent=1 // loop_exit
      _
    %359 = vsyncpa [#allocation3], 1
    %s360 = scalar_lea.sflag [#allocation3], 1
    %361 = vsyncpa %s360, 1
    %362 = vsyncpa [#allocation6], 1
    %363 = vsyncpa [#allocation4], 1
    %s364 = scalar_lea.sflag [#allocation4], 1
    %365 = vsyncpa %s364, 1

</llo_original>
